<compile_context>
chip_gen: v6e
topology: v6e:2x2x1
jax: 0.10.0
libtpu: 0.0.40
codegen_flags: <defaults>
</compile_context>

<pallas_src>
import jax
import jax.numpy as jnp
from jax.experimental import pallas as pl
from jax.experimental.pallas import tpu as pltpu


def _affine_kernel(w_ref, b_ref, x_ref, o_ref):
    # o = x_tile @ W_eff + b_eff : one (tile_b,10)x(10,10) MXU matmul + bias add.
    o_ref[...] = (
        jnp.dot(x_ref[...], w_ref[...], preferred_element_type=jnp.float32)
        + b_ref[...]
    )


def _round_up(n, m):
    return ((n + m - 1) // m) * m


def _pick_tile_b(B, max_tile=8192):
    # Small batch: one full-extent block (full array dims are always legal).
    if B <= 1024:
        return B
    # Large batch: big tiles to amortize per-step overhead, but >= 2 tiles so the
    # "parallel" batch axis can shard across both TensorCores on v7x.
    half = _round_up(pl.cdiv(B, 2), 256)
    return min(half, max_tile)


def net_task2_forward(x, conv_w, conv_b, w1, b1, w2, b2, *, tile_b=None):
    """Forward pass of net_Task2.

    x:      (B, 10)   input
    conv_w: (3,)      Conv1d(1,1,3) weight, flattened
    conv_b: (1,)      Conv1d bias
    w1:     (10, 30)  dense1.weight.T
    b1:     (30,)     dense1.bias
    w2:     (30, 10)  dense2.weight.T
    b2:     (10,)     dense2.bias
    """
    x = x.astype(jnp.float32)
    B, F = x.shape
    H = w1.shape[1]
    F_out = w2.shape[1]

    # ---- Fold the whole net into one affine map (exact: there is no nonlinearity). ----
    # band[j, i] = coefficient of x[:, j] in conv output i (tridiagonal; zero padding).
    row = jnp.arange(F, dtype=jnp.int32)[:, None]
    col = jnp.arange(F, dtype=jnp.int32)[None, :]
    band = (jnp.where(row == col - 1, conv_w[0], 0.0)
            + jnp.where(row == col, conv_w[1], 0.0)
            + jnp.where(row == col + 1, conv_w[2], 0.0)).astype(jnp.float32)
    w_eff = (band @ w1 @ w2).astype(jnp.float32)                          # (F, F_out)
    b_eff = ((conv_b[0] * jnp.ones((1, F), jnp.float32)) @ w1 @ w2
             + b1.reshape(1, H) @ w2
             + b2.reshape(1, F_out)).astype(jnp.float32)                  # (1, F_out)

    # ---- Tile the batch (natural layout, no transposes / explicit padding). ----
    if tile_b is None:
        tile_b = _pick_tile_b(B)
    tile_b = int(min(tile_b, _round_up(B, 8)))
    if tile_b < B:
        tile_b = _round_up(tile_b, 8)      # sublane-aligned unless full-extent
    n_tiles = pl.cdiv(B, tile_b)

    # VMEM: a (tile_b, 10) f32 block pads to (tile_b, 128) lanes; in + out, each
    # double-buffered, plus slack for the tiny resident weight/bias.
    vmem_need = 2 * 2 * tile_b * 128 * 4 + (2 << 20)
    vmem_limit = int(min(max(vmem_need, 16 << 20), 30 << 20))

    out = pl.pallas_call(
        _affine_kernel,
        out_shape=jax.ShapeDtypeStruct((B, F_out), jnp.float32),
        grid=(n_tiles,),
        in_specs=[
            pl.BlockSpec((F, F_out), lambda i: (0, 0)),     # fused weight (resident)
            pl.BlockSpec((1, F_out), lambda i: (0, 0)),     # fused bias   (resident)
            pl.BlockSpec((tile_b, F), lambda i: (i, 0)),    # batch tile of x
        ],
        out_specs=pl.BlockSpec((tile_b, F_out), lambda i: (i, 0)),
        compiler_params=pltpu.CompilerParams(
            dimension_semantics=("parallel",),   # batch tiles shard across TCs (v7x)
            vmem_limit_bytes=vmem_limit,
        ),
    )(w_eff, b_eff, x)

    return out                                                            # (B, F_out)


if __name__ == "__main__":
    # Small demo shapes consistent with the torch module (dense1 = Linear(10, 30) => F = 10).
    B, F, H = 200, 10, 30

    key = jax.random.PRNGKey(0)
    k = jax.random.split(key, 7)

    x = jax.random.normal(k[0], (B, F), jnp.float32)
    conv_w = 0.5 * jax.random.normal(k[1], (3,), jnp.float32)     # Conv1d weight (1,1,3) flattened
    conv_b = 0.1 * jax.random.normal(k[2], (1,), jnp.float32)     # Conv1d bias
    w1 = 0.1 * jax.random.normal(k[3], (F, H), jnp.float32)       # dense1.weight.T
    b1 = 0.1 * jax.random.normal(k[4], (H,), jnp.float32)         # dense1.bias
    w2 = 0.1 * jax.random.normal(k[5], (H, F), jnp.float32)       # dense2.weight.T
    b2 = 0.1 * jax.random.normal(k[6], (F,), jnp.float32)         # dense2.bias

    out = jax.block_until_ready(
        net_task2_forward(x, conv_w, conv_b, w1, b1, w2, b2))

    # Plain-JAX reference of the torch forward pass.
    xp = jnp.pad(x, ((0, 0), (1, 1)))
    conv_ref = (conv_w[0] * xp[:, :-2] + conv_w[1] * xp[:, 1:-1]
                + conv_w[2] * xp[:, 2:] + conv_b[0])
    ref = (conv_ref @ w1 + b1.reshape(1, -1)) @ w2 + b2.reshape(1, -1)

    assert out.shape == (B, F) and out.dtype == jnp.float32
    err = float(jnp.max(jnp.abs(out - ref)))
    assert jnp.allclose(out, ref, atol=1e-3, rtol=1e-3), err
    print("KERNEL_OK")
</pallas_src>

<mosaic_0001>
module attributes {stable_mosaic.version = 11 : i64} {
  func.func @_affine_kernel(%arg0: i32, %arg1: memref<10x10xf32, #tpu.memory_space<vmem>>, %arg2: memref<1x10xf32, #tpu.memory_space<vmem>>, %arg3: memref<200x10xf32, #tpu.memory_space<vmem>>, %arg4: memref<200x10xf32, #tpu.memory_space<vmem>>) attributes {dimension_semantics = [#tpu.dimension_semantics<parallel>], iteration_bounds = array<i64: 1>, scalar_prefetch = 0 : i64, scratch_operands = 0 : i64, tpu.core_type = #tpu.core_type<tc>, window_params = [{pipeline_mode = #tpu.pipeline_mode<synchronous>, transform_indices = @transform_0, window_bounds = array<i64: 10, 10>}, {pipeline_mode = #tpu.pipeline_mode<synchronous>, transform_indices = @transform_1, window_bounds = array<i64: 1, 10>}, {transform_indices = @transform_2, window_bounds = array<i64: 200, 10>}, {transform_indices = @transform_3, window_bounds = array<i64: 200, 10>}]} {
    %c0 = arith.constant 0 : index
    %c0_0 = arith.constant 0 : index
    %0 = vector.load %arg3[%c0, %c0_0] : memref<200x10xf32, #tpu.memory_space<vmem>>, vector<200x10xf32>
    %c0_1 = arith.constant 0 : index
    %c0_2 = arith.constant 0 : index
    %1 = vector.load %arg1[%c0_1, %c0_2] : memref<10x10xf32, #tpu.memory_space<vmem>>, vector<10x10xf32>
    %cst = arith.constant dense<0.000000e+00> : vector<200x10xf32>
    %2 = tpu.matmul %0, %1, %cst {dimension_numbers = #tpu.dot_dimension_numbers<[1], [0], [0], [1], [0, 0, 1, 1], [], []>} : vector<200x10xf32>, vector<10x10xf32>, vector<200x10xf32> -> vector<200x10xf32>
    %c0_3 = arith.constant 0 : index
    %c0_4 = arith.constant 0 : index
    %3 = vector.load %arg2[%c0_3, %c0_4] : memref<1x10xf32, #tpu.memory_space<vmem>>, vector<1x10xf32>
    %4 = vector.broadcast %3 : vector<1x10xf32> to vector<200x10xf32>
    %5 = arith.addf %2, %4 : vector<200x10xf32>
    %c0_5 = arith.constant 0 : index
    %c0_6 = arith.constant 0 : index
    %6 = vector.load %arg4[%c0_5, %c0_6] : memref<200x10xf32, #tpu.memory_space<vmem>>, vector<200x10xf32>
    tpu.vector_store %arg4[%c0_5, %c0_6], %5 {strides = array<i32>} : memref<200x10xf32, #tpu.memory_space<vmem>>, vector<200x10xf32>,
    return
  }
  func.func @transform_0(%arg0: i32) -> (i32, i32) {
    %c0_i32 = arith.constant 0 : i32
    %c0_i32_0 = arith.constant 0 : i32
    %c0_i32_1 = arith.constant 0 : i32
    return %c0_i32, %c0_i32_0 : i32, i32
  }
  func.func @transform_1(%arg0: i32) -> (i32, i32) {
    %c0_i32 = arith.constant 0 : i32
    %c0_i32_0 = arith.constant 0 : i32
    %c0_i32_1 = arith.constant 0 : i32
    return %c0_i32, %c0_i32_0 : i32, i32
  }
  func.func @transform_2(%arg0: i32) -> (i32, i32) {
    %c0_i32 = arith.constant 0 : i32
    %c0_i32_0 = arith.constant 0 : i32
    return %arg0, %c0_i32 : i32, i32
  }
  func.func @transform_3(%arg0: i32) -> (i32, i32) {
    %c0_i32 = arith.constant 0 : i32
    %c0_i32_0 = arith.constant 0 : i32
    return %arg0, %c0_i32 : i32, i32
  }
}

</mosaic_0001>

<llo_original>
// kernel: tpu_custom_call.1
$region0: #{tpu_custom_call.1}
  #allocation0 [shape = 'u32[]', space=smem, size = 0x4, offset = 0x4, fixed_abs, tag = 'smem constant byte address 0x4 - core index']
  #allocation1 [shape = 'u32[144,128]{1,0:T(1,128)}', space=vmem, size = 0x12000, scoped, tag = 'internal scratch']
  %s0 = inlined_call_operand.vmem [shape: f32[10,10], index: 0, kind: input, shape index: {}]
  %s1 = inlined_call_operand.vmem [shape: f32[1,10], index: 1, kind: input, shape index: {}]
  %s2 = inlined_call_operand.vmem [shape: f32[200,10], index: 2, kind: input, shape index: {}]
  %s3 = inlined_call_operand.vmem [shape: f32[200,10], index: 3, kind: output, shape index: {}]
  %s4 = sld [smem:[#allocation0]]
  $region22: #{tpu_custom_call.1} parent=0
    _
  %s6 = ssub.s32 1, %s4
  %s7 = scalar_select 0, %s6, %s4
  // Predicated region
  $region2: #{tpu_custom_call.1} parent=0 // pred_check
    _
  $region3: #{tpu_custom_call.1} parent=0 // pred_check_branch
    %9 = sbr.rel (0) target = $region5
  $region4: #{tpu_custom_call.1} parent=0 // pred_region
    _
  $region5: #{tpu_custom_call.1} parent=0 // pred_fallthru
    _
  // Predicated region
  $region6: #{tpu_custom_call.1} parent=0 // pred_check
    _
  $region7: #{tpu_custom_call.1} parent=0 // pred_check_branch
    %11 = sbr.rel (0) target = $region9
  $region8: #{tpu_custom_call.1} parent=0 // pred_region
    _
  $region9: #{tpu_custom_call.1} parent=0 // pred_fallthru
    _
  // Predicated region
  $region10: #{tpu_custom_call.1} parent=0 // pred_check
    _
  $region11: #{tpu_custom_call.1} parent=0 // pred_check_branch
    %13 = sbr.rel (0) target = $region13
  $region12: #{tpu_custom_call.1} parent=0 // pred_region
    _
  $region13: #{tpu_custom_call.1} parent=0 // pred_fallthru
    _
  %v14 = vld [vmem:[%s2] sm:$0xff]
  %v15 = vld [vmem:[%s2 + $0x8] sm:$0xff]
  %v16 = vld [vmem:[%s2 + $0x10] sm:$0xff]
  %v17 = vld [vmem:[%s2 + $0x18] sm:$0xff]
  %v18 = vld [vmem:[%s2 + $0x20] sm:$0xff]
  %v19 = vld [vmem:[%s2 + $0x28] sm:$0xff]
  %v20 = vld [vmem:[%s2 + $0x30] sm:$0xff]
  %v21 = vld [vmem:[%s2 + $0x38] sm:$0xff]
  %v22 = vld [vmem:[%s2 + $0x40] sm:$0xff]
  %v23 = vld [vmem:[%s2 + $0x48] sm:$0xff]
  %v24 = vld [vmem:[%s2 + $0x50] sm:$0xff]
  %v25 = vld [vmem:[%s2 + $0x58] sm:$0xff]
  %v26 = vld [vmem:[%s2 + $0x60] sm:$0xff]
  %v27 = vld [vmem:[%s2 + $0x68] sm:$0xff]
  %v28 = vld [vmem:[%s2 + $0x70] sm:$0xff]
  %v29 = vld [vmem:[%s2 + $0x78] sm:$0xff]
  %v30 = vld [vmem:[%s2 + $0x80] sm:$0xff]
  %v31 = vld [vmem:[%s2 + $0x88] sm:$0xff]
  %v32 = vld [vmem:[%s2 + $0x90] sm:$0xff]
  %v33 = vld [vmem:[%s2 + $0x98] sm:$0xff]
  %v34 = vld [vmem:[%s2 + $0xa0] sm:$0xff]
  %v35 = vld [vmem:[%s2 + $0xa8] sm:$0xff]
  %v36 = vld [vmem:[%s2 + $0xb0] sm:$0xff]
  %v37 = vld [vmem:[%s2 + $0xb8] sm:$0xff]
  %v38 = vld [vmem:[%s2 + $0xc0] sm:$0xff]
  %v39 = vld [vmem:[%s0] sm:$0xff]
  %v40 = vld [vmem:[%s0 + $0x8] sm:$0x3]
  %v41 = vld [vmem:[%s1] sm:$0x1]
  %v43 = vlaneseq
  %v44 = vshrl.u32 %v43, 7
  %v45 = vsub.s32 0, %v44
  %v46 = vrot.slane %v41, %v45
  %vm48 = vcmask 80896
  %v50 = vsel %vm48, %v14, 0
  %v53 = vsel %vm48, %v15, 0
  %v56 = vsel %vm48, %v16, 0
  %v59 = vsel %vm48, %v17, 0
  %v62 = vsel %vm48, %v18, 0
  %v65 = vsel %vm48, %v19, 0
  %v68 = vsel %vm48, %v20, 0
  %v71 = vsel %vm48, %v21, 0
  %v74 = vsel %vm48, %v22, 0
  %v77 = vsel %vm48, %v23, 0
  %v80 = vsel %vm48, %v24, 0
  %v83 = vsel %vm48, %v25, 0
  %v86 = vsel %vm48, %v26, 0
  %v89 = vsel %vm48, %v27, 0
  %v92 = vsel %vm48, %v28, 0
  %v95 = vsel %vm48, %v29, 0
  %v98 = vsel %vm48, %v30, 0
  %v101 = vsel %vm48, %v31, 0
  %v104 = vsel %vm48, %v32, 0
  %v107 = vsel %vm48, %v33, 0
  %v110 = vsel %vm48, %v34, 0
  %v113 = vsel %vm48, %v35, 0
  %v116 = vsel %vm48, %v36, 0
  %v119 = vsel %vm48, %v37, 0
  %v122 = vsel %vm48, %v38, 0
  %vm124 = vcmask 1041408
  %v126 = vsel %vm124, %v40, 0
  %128 = vmatprep.subr.mxu0 0.0
  %129 = vmatpush1.msra.mxu0 0.0
  %130 = vmatprep.subr.mxu0 0.0
  %131 = vmatpush1.msra.mxu0 0.0
  %132 = vmatprep.subr.mxu0 0.0
  %133 = vmatpush1.msra.mxu0 0.0
  %134 = vmatprep.subr.mxu0 0.0
  %135 = vmatpush1.msra.mxu0 0.0
  %136 = vmatprep.subr.mxu0 0.0
  %137 = vmatpush1.msra.mxu0 0.0
  %138 = vmatprep.subr.mxu0 0.0
  %139 = vmatpush1.msra.mxu0 0.0
  %140 = vmatprep.subr.mxu0 0.0
  %141 = vmatpush1.msra.mxu0 0.0
  %142 = vmatprep.subr.mxu0 0.0
  %143 = vmatpush1.msra.mxu0 0.0
  %144 = vmatprep.subr.mxu0 0.0
  %145 = vmatpush1.msra.mxu0 0.0
  %146 = vmatprep.subr.mxu0 0.0
  %147 = vmatpush1.msra.mxu0 0.0
  %148 = vmatprep.subr.mxu0 0.0
  %149 = vmatpush1.msra.mxu0 0.0
  %150 = vmatprep.subr.mxu0 0.0
  %151 = vmatpush1.msra.mxu0 0.0
  %152 = vmatprep.subr.mxu0 0.0
  %153 = vmatpush1.msra.mxu0 0.0
  %154 = vmatprep.subr.mxu0 0.0
  %155 = vmatpush1.msra.mxu0 0.0
  %156 = vmatprep.subr.mxu0 0.0
  %157 = vmatpush1.msra.mxu0 %v126
  %158 = vmatprep.subr.mxu0 0.0
  %159 = vmatpush1.msra.mxu0 %v39
  %160 = vmatprep.subr.mxu0 0.0
  %161 = vmatpush2.msra.mxu0 0.0
  %162 = vmatprep.subr.mxu0 0.0
  %163 = vmatpush2.msra.mxu0 0.0
  %164 = vmatprep.subr.mxu0 0.0
  %165 = vmatpush2.msra.mxu0 0.0
  %166 = vmatprep.subr.mxu0 0.0
  %167 = vmatpush2.msra.mxu0 0.0
  %168 = vmatprep.subr.mxu0 0.0
  %169 = vmatpush2.msra.mxu0 0.0
  %170 = vmatprep.subr.mxu0 0.0
  %171 = vmatpush2.msra.mxu0 0.0
  %172 = vmatprep.subr.mxu0 0.0
  %173 = vmatpush2.msra.mxu0 0.0
  %174 = vmatprep.subr.mxu0 0.0
  %175 = vmatpush2.msra.mxu0 0.0
  %176 = vmatprep.subr.mxu0 0.0
  %177 = vmatpush2.msra.mxu0 0.0
  %178 = vmatprep.subr.mxu0 0.0
  %179 = vmatpush2.msra.mxu0 0.0
  %180 = vmatprep.subr.mxu0 0.0
  %181 = vmatpush2.msra.mxu0 0.0
  %182 = vmatprep.subr.mxu0 0.0
  %183 = vmatpush2.msra.mxu0 0.0
  %184 = vmatprep.subr.mxu0 0.0
  %185 = vmatpush2.msra.mxu0 0.0
  %186 = vmatprep.subr.mxu0 0.0
  %187 = vmatpush2.msra.mxu0 0.0
  %188 = vmatprep.subr.mxu0 0.0
  %189 = vmatpush2.msra.mxu0 0.0
  %190 = vmatprep.subr.mxu0 0.0
  %191 = vmatpush2.msra.mxu0 0.0
  %192 = vmatprep.mubr.f32.mxu0 0.0
  %193 = vmatmul.mubr.f32.gmra.mxu0 %v50
  %v194 = vpop.f32.mrf.mxu0
  %v195 = vadd.f32 %v46, %v194
  %v196 = vpop.f32.mrf.mxu0
  %197 = vmatprep.mubr.f32.mxu0 0.0
  %198 = vmatmul.mubr.f32.gmra.mxu0 %v53
  %v199 = vpop.f32.mrf.mxu0
  %v200 = vadd.f32 %v46, %v199
  %v201 = vpop.f32.mrf.mxu0
  %202 = vmatprep.mubr.f32.mxu0 0.0
  %203 = vmatmul.mubr.f32.gmra.mxu0 %v56
  %v204 = vpop.f32.mrf.mxu0
  %v205 = vadd.f32 %v46, %v204
  %v206 = vpop.f32.mrf.mxu0
  %207 = vmatprep.mubr.f32.mxu0 0.0
  %208 = vmatmul.mubr.f32.gmra.mxu0 %v59
  %v209 = vpop.f32.mrf.mxu0
  %v210 = vadd.f32 %v46, %v209
  %v211 = vpop.f32.mrf.mxu0
  %212 = vmatprep.mubr.f32.mxu0 0.0
  %213 = vmatmul.mubr.f32.gmra.mxu0 %v62
  %v214 = vpop.f32.mrf.mxu0
  %v215 = vadd.f32 %v46, %v214
  %v216 = vpop.f32.mrf.mxu0
  %217 = vmatprep.mubr.f32.mxu0 0.0
  %218 = vmatmul.mubr.f32.gmra.mxu0 %v65
  %v219 = vpop.f32.mrf.mxu0
  %v220 = vadd.f32 %v46, %v219
  %v221 = vpop.f32.mrf.mxu0
  %222 = vmatprep.mubr.f32.mxu0 0.0
  %223 = vmatmul.mubr.f32.gmra.mxu0 %v68
  %v224 = vpop.f32.mrf.mxu0
  %v225 = vadd.f32 %v46, %v224
  %v226 = vpop.f32.mrf.mxu0
  %227 = vmatprep.mubr.f32.mxu0 0.0
  %228 = vmatmul.mubr.f32.gmra.mxu0 %v71
  %v229 = vpop.f32.mrf.mxu0
  %v230 = vadd.f32 %v46, %v229
  %v231 = vpop.f32.mrf.mxu0
  %232 = vmatprep.mubr.f32.mxu0 0.0
  %233 = vmatmul.mubr.f32.gmra.mxu0 %v74
  %v234 = vpop.f32.mrf.mxu0
  %v235 = vadd.f32 %v46, %v234
  %v236 = vpop.f32.mrf.mxu0
  %237 = vmatprep.mubr.f32.mxu0 0.0
  %238 = vmatmul.mubr.f32.gmra.mxu0 %v77
  %v239 = vpop.f32.mrf.mxu0
  %v240 = vadd.f32 %v46, %v239
  %v241 = vpop.f32.mrf.mxu0
  %242 = vmatprep.mubr.f32.mxu0 0.0
  %243 = vmatmul.mubr.f32.gmra.mxu0 %v80
  %v244 = vpop.f32.mrf.mxu0
  %v245 = vadd.f32 %v46, %v244
  %v246 = vpop.f32.mrf.mxu0
  %247 = vmatprep.mubr.f32.mxu0 0.0
  %248 = vmatmul.mubr.f32.gmra.mxu0 %v83
  %v249 = vpop.f32.mrf.mxu0
  %v250 = vadd.f32 %v46, %v249
  %v251 = vpop.f32.mrf.mxu0
  %252 = vmatprep.mubr.f32.mxu0 0.0
  %253 = vmatmul.mubr.f32.gmra.mxu0 %v86
  %v254 = vpop.f32.mrf.mxu0
  %v255 = vadd.f32 %v46, %v254
  %v256 = vpop.f32.mrf.mxu0
  %257 = vmatprep.mubr.f32.mxu0 0.0
  %258 = vmatmul.mubr.f32.gmra.mxu0 %v89
  %v259 = vpop.f32.mrf.mxu0
  %v260 = vadd.f32 %v46, %v259
  %v261 = vpop.f32.mrf.mxu0
  %262 = vmatprep.mubr.f32.mxu0 0.0
  %263 = vmatmul.mubr.f32.gmra.mxu0 %v92
  %v264 = vpop.f32.mrf.mxu0
  %v265 = vadd.f32 %v46, %v264
  %v266 = vpop.f32.mrf.mxu0
  %267 = vmatprep.mubr.f32.mxu0 0.0
  %268 = vmatmul.mubr.f32.gmra.mxu0 %v95
  %v269 = vpop.f32.mrf.mxu0
  %v270 = vadd.f32 %v46, %v269
  %v271 = vpop.f32.mrf.mxu0
  %272 = vmatprep.mubr.f32.mxu0 0.0
  %273 = vmatmul.mubr.f32.gmra.mxu0 %v98
  %v274 = vpop.f32.mrf.mxu0
  %v275 = vadd.f32 %v46, %v274
  %v276 = vpop.f32.mrf.mxu0
  %277 = vmatprep.mubr.f32.mxu0 0.0
  %278 = vmatmul.mubr.f32.gmra.mxu0 %v101
  %v279 = vpop.f32.mrf.mxu0
  %v280 = vadd.f32 %v46, %v279
  %v281 = vpop.f32.mrf.mxu0
  %282 = vmatprep.mubr.f32.mxu0 0.0
  %283 = vmatmul.mubr.f32.gmra.mxu0 %v104
  %v284 = vpop.f32.mrf.mxu0
  %v285 = vadd.f32 %v46, %v284
  %v286 = vpop.f32.mrf.mxu0
  %287 = vmatprep.mubr.f32.mxu0 0.0
  %288 = vmatmul.mubr.f32.gmra.mxu0 %v107
  %v289 = vpop.f32.mrf.mxu0
  %v290 = vadd.f32 %v46, %v289
  %v291 = vpop.f32.mrf.mxu0
  %292 = vmatprep.mubr.f32.mxu0 0.0
  %293 = vmatmul.mubr.f32.gmra.mxu0 %v110
  %v294 = vpop.f32.mrf.mxu0
  %v295 = vadd.f32 %v46, %v294
  %v296 = vpop.f32.mrf.mxu0
  %297 = vmatprep.mubr.f32.mxu0 0.0
  %298 = vmatmul.mubr.f32.gmra.mxu0 %v113
  %v299 = vpop.f32.mrf.mxu0
  %v300 = vadd.f32 %v46, %v299
  %v301 = vpop.f32.mrf.mxu0
  %302 = vmatprep.mubr.f32.mxu0 0.0
  %303 = vmatmul.mubr.f32.gmra.mxu0 %v116
  %v304 = vpop.f32.mrf.mxu0
  %v305 = vadd.f32 %v46, %v304
  %v306 = vpop.f32.mrf.mxu0
  %307 = vmatprep.mubr.f32.mxu0 0.0
  %308 = vmatmul.mubr.f32.gmra.mxu0 %v119
  %v309 = vpop.f32.mrf.mxu0
  %v310 = vadd.f32 %v46, %v309
  %v311 = vpop.f32.mrf.mxu0
  %312 = vmatprep.mubr.f32.mxu0 0.0
  %313 = vmatmul.mubr.f32.gmra.mxu0 %v122
  %v314 = vpop.f32.mrf.mxu0
  %v315 = vadd.f32 %v46, %v314
  %v316 = vpop.f32.mrf.mxu0
  %317 = vdwg.mxu0
  %318 = vst.msk [vmem:[%s3] sm:$0xff] %vm48, %v195
  %319 = vst.msk [vmem:[%s3 + $0x8] sm:$0xff] %vm48, %v200
  %320 = vst.msk [vmem:[%s3 + $0x10] sm:$0xff] %vm48, %v205
  %321 = vst.msk [vmem:[%s3 + $0x18] sm:$0xff] %vm48, %v210
  %322 = vst.msk [vmem:[%s3 + $0x20] sm:$0xff] %vm48, %v215
  %323 = vst.msk [vmem:[%s3 + $0x28] sm:$0xff] %vm48, %v220
  %324 = vst.msk [vmem:[%s3 + $0x30] sm:$0xff] %vm48, %v225
  %325 = vst.msk [vmem:[%s3 + $0x38] sm:$0xff] %vm48, %v230
  %326 = vst.msk [vmem:[%s3 + $0x40] sm:$0xff] %vm48, %v235
  %327 = vst.msk [vmem:[%s3 + $0x48] sm:$0xff] %vm48, %v240
  %328 = vst.msk [vmem:[%s3 + $0x50] sm:$0xff] %vm48, %v245
  %329 = vst.msk [vmem:[%s3 + $0x58] sm:$0xff] %vm48, %v250
  %330 = vst.msk [vmem:[%s3 + $0x60] sm:$0xff] %vm48, %v255
  %331 = vst.msk [vmem:[%s3 + $0x68] sm:$0xff] %vm48, %v260
  %332 = vst.msk [vmem:[%s3 + $0x70] sm:$0xff] %vm48, %v265
  %333 = vst.msk [vmem:[%s3 + $0x78] sm:$0xff] %vm48, %v270
  %334 = vst.msk [vmem:[%s3 + $0x80] sm:$0xff] %vm48, %v275
  %335 = vst.msk [vmem:[%s3 + $0x88] sm:$0xff] %vm48, %v280
  %336 = vst.msk [vmem:[%s3 + $0x90] sm:$0xff] %vm48, %v285
  %337 = vst.msk [vmem:[%s3 + $0x98] sm:$0xff] %vm48, %v290
  %338 = vst.msk [vmem:[%s3 + $0xa0] sm:$0xff] %vm48, %v295
  %339 = vst.msk [vmem:[%s3 + $0xa8] sm:$0xff] %vm48, %v300
  %340 = vst.msk [vmem:[%s3 + $0xb0] sm:$0xff] %vm48, %v305
  %341 = vst.msk [vmem:[%s3 + $0xb8] sm:$0xff] %vm48, %v310
  %342 = vst.msk [vmem:[%s3 + $0xc0] sm:$0xff] %vm48, %v315
  // Predicated region
  $region14: #{tpu_custom_call.1} parent=0 // pred_check
    _
  $region15: #{tpu_custom_call.1} parent=0 // pred_check_branch
    %344 = sbr.rel (0) target = $region17
  $region16: #{tpu_custom_call.1} parent=0 // pred_region
    _
  $region17: #{tpu_custom_call.1} parent=0 // pred_fallthru
    _
  // Predicated region
  $region18: #{tpu_custom_call.1} parent=0 // pred_check
    _
  $region19: #{tpu_custom_call.1} parent=0 // pred_check_branch
    %346 = sbr.rel (0) target = $region21
  $region20: #{tpu_custom_call.1} parent=0 // pred_region
    _
  $region21: #{tpu_custom_call.1} parent=0 // pred_fallthru
    _

</llo_original>
